<compile_context>
chip_gen: v7x
topology: tpu7x:2x2x1
jax: 0.10.0
libtpu: 0.0.40
codegen_flags: <defaults>
</compile_context>

<pallas_src>
import jax
import jax.numpy as jnp
from jax.experimental import pallas as pl
from jax.experimental.pallas import tpu as pltpu


IN_DIM = 28 * 28   # 784
HID_DIM = 512

# Max batch tile: 512 rows keeps double-buffered VMEM ~6.5 MiB (safe on
# v5e/v6e/v7x defaults) and reaches ~85% of HBM roofline for the mem-bound
# x stream while fully filling the MXU M dimension.
TILE_B_MAX = 512

# Per-grid-step fixed overhead (~0.35us) expressed in "rows of x DMA" (~3 ns
# per 3136-byte f32 row at ~1.3 TB/s) -- used by the tile chooser's cost model.
_STEP_OVERHEAD_ROWS = 128


def _round_up(n, m):
    return ((n + m - 1) // m) * m


def _disc_kernel(x_ref, w1_ref, b1_ref, w2_ref, b2_ref, o_ref):
    # fc1 on the MXU: bf16 inputs, f32 accumulation.  Both x and w1 arrive as
    # f32 (single HBM pass, no wrapper-side convert op) and are cast in VMEM;
    # the casts occupy load/VALU slots that are idle while the kernel is
    # HBM/MXU bound.
    x_bf = x_ref[...].astype(jnp.bfloat16)
    w1_bf = w1_ref[...].astype(jnp.bfloat16)
    h = jnp.dot(x_bf, w1_bf, preferred_element_type=jnp.float32)
    h = h + b1_ref[...]
    # LeakyReLU(0.1) on the VPU.
    h = jnp.where(h > 0, h, 0.1 * h)
    # fc2 has a single output unit: VPU multiply + XLU lane reduction against
    # the (1, 512) w2 row.  Avoids a 127/128-zero-column padded MXU matmul.
    z = jnp.sum(h * w2_ref[...], axis=-1, keepdims=True) + b2_ref[...]
    # Sigmoid on just the TILE_B real values (exp -> EUP slot).
    o_ref[...] = 1.0 / (1.0 + jnp.exp(-z))


def _choose_tile(batch):
    """Pick (tile_b, padded_batch); tile is a multiple of 8, <= TILE_B_MAX."""
    b8 = _round_up(max(batch, 1), 8)
    if b8 <= TILE_B_MAX:
        tile, padded = b8, b8
    else:
        # Minimize (total padded rows + steps * per-step overhead in rows),
        # ties broken toward the larger tile (fewer grid steps).
        best = None
        for t in range(8, TILE_B_MAX + 1, 8):
            padded_t = _round_up(b8, t)
            cost = padded_t + (padded_t // t) * _STEP_OVERHEAD_ROWS
            if best is None or cost < best[0] or (cost == best[0] and t > best[1]):
                best = (cost, t, padded_t)
        _, tile, padded = best
    # v7x megacore: prefer >=2 batch tiles so the "parallel" grid axis can be
    # sharded across the two TensorCores.  Only split when the half-tile is
    # still a valid (multiple-of-8) sublane block.
    if padded == tile and tile >= 256 and (tile // 2) % 8 == 0:
        tile //= 2
    return tile, padded


@jax.jit
def discriminator_forward(x, w1, b1, w2, b2):
    """x: any shape whose trailing dims flatten to 784 (e.g. (B,1,28,28)).
    w1: (784, 512), b1: (512,), w2: (512, 1), b2: (1,).
    Returns (B, 1) float32, matching the PyTorch module output."""
    x = x.reshape(-1, IN_DIM).astype(jnp.float32)
    batch = x.shape[0]

    tile_b, padded_b = _choose_tile(batch)
    if padded_b != batch:
        # Only hit for ragged / tiny batches; usual training batches
        # (multiples of 8 up to 512, multiples of the tile above) are no-copy.
        x = jnp.pad(x, ((0, padded_b - batch), (0, 0)))

    # Parameter shaping (tiny, metadata-level): biases and the w2 row become
    # 2-D so they map onto (sublane, lane) tiles.  w1 stays f32; it is cast to
    # bf16 inside the kernel (its block is grid-resident -> one HBM read).
    w1_f32 = w1.astype(jnp.float32)
    b1_2d = b1.reshape(1, HID_DIM).astype(jnp.float32)
    w2_row = w2.reshape(1, HID_DIM).astype(jnp.float32)
    b2_2d = b2.reshape(1, 1).astype(jnp.float32)

    grid = (padded_b // tile_b,)

    out = pl.pallas_call(
        _disc_kernel,
        out_shape=jax.ShapeDtypeStruct((padded_b, 1), jnp.float32),
        grid_spec=pltpu.PrefetchScalarGridSpec(
            num_scalar_prefetch=0,
            grid=grid,
            in_specs=[
                pl.BlockSpec((tile_b, IN_DIM), lambda i: (i, 0)),   # x tile
                pl.BlockSpec((IN_DIM, HID_DIM), lambda i: (0, 0)),  # w1 (resident)
                pl.BlockSpec((1, HID_DIM), lambda i: (0, 0)),       # b1
                pl.BlockSpec((1, HID_DIM), lambda i: (0, 0)),       # w2 row
                pl.BlockSpec((1, 1), lambda i: (0, 0)),             # b2
            ],
            out_specs=pl.BlockSpec((tile_b, 1), lambda i: (i, 0)),
        ),
        compiler_params=pltpu.CompilerParams(
            dimension_semantics=("parallel",),
        ),
    )(x, w1_f32, b1_2d, w2_row, b2_2d)

    return out[:batch] if padded_b != batch else out


def init_params(key):
    """Deterministic init matching nn.Linear's U(-1/sqrt(fan_in), +1/sqrt(fan_in))."""
    k1, k2, k3, k4 = jax.random.split(key, 4)
    bound1 = 1.0 / jnp.sqrt(jnp.float32(IN_DIM))
    bound2 = 1.0 / jnp.sqrt(jnp.float32(HID_DIM))
    w1 = jax.random.uniform(k1, (IN_DIM, HID_DIM), jnp.float32, -bound1, bound1)
    b1 = jax.random.uniform(k2, (HID_DIM,), jnp.float32, -bound1, bound1)
    w2 = jax.random.uniform(k3, (HID_DIM, 1), jnp.float32, -bound2, bound2)
    b2 = jax.random.uniform(k4, (1,), jnp.float32, -bound2, bound2)
    return w1, b1, w2, b2


def _reference_forward_f32(x, w1, b1, w2, b2):
    x = x.reshape(-1, IN_DIM).astype(jnp.float32)
    h = x @ w1 + b1
    h = jnp.where(h > 0, h, 0.1 * h)
    z = h @ w2.reshape(HID_DIM, 1) + b2.reshape(1, 1)
    return jax.nn.sigmoid(z)


def _reference_forward_bf16(x, w1, b1, w2, b2):
    """Matches the kernel's precision choices: bf16 MXU inputs, f32 accumulation."""
    x = x.reshape(-1, IN_DIM).astype(jnp.bfloat16)
    h = jnp.dot(x, w1.astype(jnp.bfloat16), preferred_element_type=jnp.float32)
    h = h + b1.astype(jnp.float32)
    h = jnp.where(h > 0, h, 0.1 * h)
    z = jnp.dot(h, w2.reshape(HID_DIM, 1).astype(jnp.float32),
                preferred_element_type=jnp.float32) + b2.reshape(1, 1)
    return jax.nn.sigmoid(z)


if __name__ == "__main__":
    key = jax.random.PRNGKey(0)
    kp, kx = jax.random.split(key)
    w1, b1, w2, b2 = init_params(kp)

    # Small example input consistent with the module: MNIST-like images, batch=4.
    x = jax.random.normal(kx, (4, 1, 28, 28), jnp.float32)

    out = discriminator_forward(x, w1, b1, w2, b2)
    out = jax.block_until_ready(out)
    assert out.shape == (4, 1), out.shape

    # Tight check against a matched-precision (bf16 matmul, f32 accum) reference,
    # loose check against the pure-f32 PyTorch-equivalent reference.
    ref_match = _reference_forward_bf16(x, w1, b1, w2, b2)
    ref_f32 = _reference_forward_f32(x, w1, b1, w2, b2)
    err_match = float(jnp.max(jnp.abs(out - ref_match)))
    err_f32 = float(jnp.max(jnp.abs(out - ref_f32)))
    assert err_match < 1e-4, err_match
    assert err_f32 < 1e-2, err_f32

    print("KERNEL_OK")
</pallas_src>

<mosaic_0001>
module attributes {stable_mosaic.version = 11 : i64} {
  func.func @_disc_kernel(%arg0: i32, %arg1: memref<8x784xf32, #tpu.memory_space<vmem>>, %arg2: memref<784x512xf32, #tpu.memory_space<vmem>>, %arg3: memref<1x512xf32, #tpu.memory_space<vmem>>, %arg4: memref<1x512xf32, #tpu.memory_space<vmem>>, %arg5: memref<1x1xf32, #tpu.memory_space<vmem>>, %arg6: memref<8x1xf32, #tpu.memory_space<vmem>>) attributes {dimension_semantics = [#tpu.dimension_semantics<parallel>], iteration_bounds = array<i64: 1>, scalar_prefetch = 0 : i64, scratch_operands = 0 : i64, tpu.core_type = #tpu.core_type<tc>, window_params = [{transform_indices = @transform_0, window_bounds = array<i64: 8, 784>}, {pipeline_mode = #tpu.pipeline_mode<synchronous>, transform_indices = @transform_1, window_bounds = array<i64: 784, 512>}, {pipeline_mode = #tpu.pipeline_mode<synchronous>, transform_indices = @transform_2, window_bounds = array<i64: 1, 512>}, {pipeline_mode = #tpu.pipeline_mode<synchronous>, transform_indices = @transform_3, window_bounds = array<i64: 1, 512>}, {pipeline_mode = #tpu.pipeline_mode<synchronous>, transform_indices = @transform_4, window_bounds = array<i64: 1, 1>}, {transform_indices = @transform_5, window_bounds = array<i64: 8, 1>}]} {
    %c0 = arith.constant 0 : index
    %c0_0 = arith.constant 0 : index
    %0 = vector.load %arg1[%c0, %c0_0] : memref<8x784xf32, #tpu.memory_space<vmem>>, vector<8x784xf32>
    %1 = arith.truncf %0 : vector<8x784xf32> to vector<8x784xbf16>
    %c0_1 = arith.constant 0 : index
    %c0_2 = arith.constant 0 : index
    %2 = vector.load %arg2[%c0_1, %c0_2] : memref<784x512xf32, #tpu.memory_space<vmem>>, vector<784x512xf32>
    %3 = arith.truncf %2 : vector<784x512xf32> to vector<784x512xbf16>
    %cst = arith.constant dense<0.000000e+00> : vector<8x512xf32>
    %4 = tpu.matmul %1, %3, %cst {dimension_numbers = #tpu.dot_dimension_numbers<[1], [0], [0], [1], [0, 0, 1, 1], [], []>} : vector<8x784xbf16>, vector<784x512xbf16>, vector<8x512xf32> -> vector<8x512xf32>
    %c0_3 = arith.constant 0 : index
    %c0_4 = arith.constant 0 : index
    %5 = vector.load %arg3[%c0_3, %c0_4] : memref<1x512xf32, #tpu.memory_space<vmem>>, vector<1x512xf32>
    %6 = vector.broadcast %5 : vector<1x512xf32> to vector<8x512xf32>
    %7 = arith.addf %4, %6 : vector<8x512xf32>
    %cst_5 = arith.constant 0.000000e+00 : f32
    %8 = vector.broadcast %cst_5 : f32 to vector<8x512xf32>
    %9 = arith.cmpf ogt, %7, %8 : vector<8x512xf32>
    %cst_6 = arith.constant 1.000000e-01 : f32
    %10 = vector.broadcast %cst_6 : f32 to vector<8x512xf32>
    %11 = arith.mulf %10, %7 : vector<8x512xf32>
    %12 = arith.select %9, %7, %11 : vector<8x512xi1>, vector<8x512xf32>
    %c0_7 = arith.constant 0 : index
    %c0_8 = arith.constant 0 : index
    %13 = vector.load %arg4[%c0_7, %c0_8] : memref<1x512xf32, #tpu.memory_space<vmem>>, vector<1x512xf32>
    %14 = vector.broadcast %13 : vector<1x512xf32> to vector<8x512xf32>
    %15 = arith.mulf %12, %14 : vector<8x512xf32>
    %cst_9 = arith.constant dense<0.000000e+00> : vector<8xf32>
    %16 = vector.multi_reduction <add>, %15, %cst_9 [1] : vector<8x512xf32> to vector<8xf32>
    %17 = vector.shape_cast %16 : vector<8xf32> to vector<8x1xf32>
    %c0_10 = arith.constant 0 : index
    %c0_11 = arith.constant 0 : index
    %18 = vector.load %arg5[%c0_10, %c0_11] : memref<1x1xf32, #tpu.memory_space<vmem>>, vector<1x1xf32>
    %19 = vector.broadcast %18 : vector<1x1xf32> to vector<8x1xf32>
    %20 = arith.addf %17, %19 : vector<8x1xf32>
    %cst_12 = arith.constant 0.000000e+00 : f32
    %21 = vector.broadcast %cst_12 : f32 to vector<8x1xf32>
    %22 = arith.subf %21, %20 : vector<8x1xf32>
    %23 = math.exp %22 : vector<8x1xf32>
    %cst_13 = arith.constant 1.000000e+00 : f32
    %24 = vector.broadcast %cst_13 : f32 to vector<8x1xf32>
    %25 = arith.addf %24, %23 : vector<8x1xf32>
    %cst_14 = arith.constant 1.000000e+00 : f32
    %26 = vector.broadcast %cst_14 : f32 to vector<8x1xf32>
    %27 = arith.divf %26, %25 : vector<8x1xf32>
    %c0_15 = arith.constant 0 : index
    %c0_16 = arith.constant 0 : index
    %28 = vector.load %arg6[%c0_15, %c0_16] : memref<8x1xf32, #tpu.memory_space<vmem>>, vector<8x1xf32>
    tpu.vector_store %arg6[%c0_15, %c0_16], %27 {strides = array<i32>} : memref<8x1xf32, #tpu.memory_space<vmem>>, vector<8x1xf32>,
    return
  }
  func.func @transform_0(%arg0: i32) -> (i32, i32) {
    %c0_i32 = arith.constant 0 : i32
    %c0_i32_0 = arith.constant 0 : i32
    return %arg0, %c0_i32 : i32, i32
  }
  func.func @transform_1(%arg0: i32) -> (i32, i32) {
    %c0_i32 = arith.constant 0 : i32
    %c0_i32_0 = arith.constant 0 : i32
    %c0_i32_1 = arith.constant 0 : i32
    return %c0_i32, %c0_i32_0 : i32, i32
  }
  func.func @transform_2(%arg0: i32) -> (i32, i32) {
    %c0_i32 = arith.constant 0 : i32
    %c0_i32_0 = arith.constant 0 : i32
    %c0_i32_1 = arith.constant 0 : i32
    return %c0_i32, %c0_i32_0 : i32, i32
  }
  func.func @transform_3(%arg0: i32) -> (i32, i32) {
    %c0_i32 = arith.constant 0 : i32
    %c0_i32_0 = arith.constant 0 : i32
    %c0_i32_1 = arith.constant 0 : i32
    return %c0_i32, %c0_i32_0 : i32, i32
  }
  func.func @transform_4(%arg0: i32) -> (i32, i32) {
    %c0_i32 = arith.constant 0 : i32
    %c0_i32_0 = arith.constant 0 : i32
    %c0_i32_1 = arith.constant 0 : i32
    return %c0_i32, %c0_i32_0 : i32, i32
  }
  func.func @transform_5(%arg0: i32) -> (i32, i32) {
    %c0_i32 = arith.constant 0 : i32
    %c0_i32_0 = arith.constant 0 : i32
    return %arg0, %c0_i32 : i32, i32
  }
}

</mosaic_0001>

<llo_original>
// kernel: discriminator_forward.1
$region0: #{discriminator_forward.1}
  #allocation0 [shape = 'u32[]', space=smem, size = 0x4, offset = 0x4, fixed_abs, tag = 'smem constant byte address 0x4 - core index']
  #allocation1 [shape = 'u32[144,128]{1,0:T(1,128)}', space=vmem, size = 0x12000, scoped, tag = 'internal scratch']
  #allocation2 [shape = 'f32[1,1]{1,0:T(1,128)S(1)}', space=vmem, size = 0x200, scoped, tag = 'scoped memory for discriminator_forward.1']
  %s0 = inlined_call_operand.vmem [shape: f32[8,784], index: 0, kind: input, shape index: {}]
  %s1 = inlined_call_operand.hbm [shape: f32[784,512], index: 1, kind: input, shape index: {}]
  %s2 = inlined_call_operand.hbm [shape: f32[1,512], index: 2, kind: input, shape index: {}]
  %s3 = inlined_call_operand.hbm [shape: f32[1,512], index: 3, kind: input, shape index: {}]
  %s4 = inlined_call_operand.<no memory space> [shape: f32[1,1], index: 4, kind: input, shape index: {}]
  %s5 = inlined_call_operand.vmem [shape: f32[8,1], index: 5, kind: output, shape index: {}]
  %s6 = sld [smem:[#allocation0]]
  $region42: #{discriminator_forward.1} parent=0
    _
  %s8 = ssub.s32 1, %s6
  %s9 = scalar_select 0, %s8, %s6
  %v10 = vstv %s4
  %11 = vst [vmem:[#allocation2] sm:$0x1] %v10
  $region1: #{discriminator_forward.1} parent=0
    #allocation3 [shape = 'u8[1605632]{0}', space=vmem, size = 0x188000, scoped, tag = 'input window, operand 1, single buffered']
    #allocation4 [shape = 's32[1]{0}', space=sflag, size = 0x4, scoped, tag = 'scoped memory for discriminator_forward.1']
    #allocation5 [shape = 'u8[2048]{0}', space=vmem, size = 0x800, scoped, tag = 'input window, operand 2, single buffered']
    #allocation6 [shape = 's32[1]{0}', space=sflag, size = 0x4, scoped, tag = 'scoped memory for discriminator_forward.1']
    #allocation7 [shape = 'u8[2048]{0}', space=vmem, size = 0x800, scoped, tag = 'input window, operand 3, single buffered']
    %12 = vsyncpa [#allocation4], 0
    %13 = vsyncpa [#allocation6], 0
    // Predicated region
    $region2: #{discriminator_forward.1} parent=1 // pred_check
      _
    $region3: #{discriminator_forward.1} parent=1 // pred_check_branch
      %15 = sbr.rel (0) target = $region5
    $region4: #{discriminator_forward.1} parent=1 // pred_region
      _
    $region5: #{discriminator_forward.1} parent=1 // pred_fallthru
      _
    // Predicated region
    $region6: #{discriminator_forward.1} parent=1 // pred_check
      _
    $region7: #{discriminator_forward.1} parent=1 // pred_check_branch
      %17 = sbr.rel (0) target = $region9
    $region8: #{discriminator_forward.1} parent=1 // pred_region
      %s19 = ssub.s32 50176, 50176
      %20 = vsyncadd [#allocation4], %s19
      %s21 = sshll.u32 [#allocation3], 4
      %s22 = int_to_ptr.vmem [resolvable:$true] %s21
      %27 = dma.hbm_to_vmem [thread:$0]  %s1, 50176, %s22, [#allocation4], 512, 512, 32
    $region9: #{discriminator_forward.1} parent=1 // pred_fallthru
      _
    // Predicated region
    $region10: #{discriminator_forward.1} parent=1 // pred_check
      _
    $region11: #{discriminator_forward.1} parent=1 // pred_check_branch
      %29 = sbr.rel (0) target = $region13
    $region12: #{discriminator_forward.1} parent=1 // pred_region
      %s31 = ssub.s32 64, 64
      %32 = vsyncadd [#allocation6], %s31
      %s34 = sshll.u32 [#allocation5], 4
      %s35 = int_to_ptr.vmem [resolvable:$true] %s34
      %37 = dma.hbm_to_vmem [thread:$0]  %s2, 64, %s35, [#allocation6]
    $region13: #{discriminator_forward.1} parent=1 // pred_fallthru
      _
    // Predicated region
    $region14: #{discriminator_forward.1} parent=1 // pred_check
      _
    $region15: #{discriminator_forward.1} parent=1 // pred_check_branch
      %39 = sbr.rel (0) target = $region17
    $region16: #{discriminator_forward.1} parent=1 // pred_region
      %s41 = ssub.s32 64, 64
      %42 = vsyncadd [#allocation6], %s41
      %s44 = sshll.u32 [#allocation7], 4
      %s45 = int_to_ptr.vmem [resolvable:$true] %s44
      %47 = dma.hbm_to_vmem [thread:$0]  %s3, 64, %s45, [#allocation6]
    $region17: #{discriminator_forward.1} parent=1 // pred_fallthru
      _
    // Predicated region
    $region18: #{discriminator_forward.1} parent=1 // pred_check
      _
    $region19: #{discriminator_forward.1} parent=1 // pred_check_branch
      %49 = sbr.rel (0) target = $region21
    $region20: #{discriminator_forward.1} parent=1 // pred_region
      _
    $region21: #{discriminator_forward.1} parent=1 // pred_fallthru
      _
    // Predicated region
    $region22: #{discriminator_forward.1} parent=1 // pred_check
      _
    $region23: #{discriminator_forward.1} parent=1 // pred_check_branch
      %51 = sbr.rel (0) target = $region25
    $region24: #{discriminator_forward.1} parent=1 // pred_region
      %52 = dma.done [#allocation4], 50176
    $region25: #{discriminator_forward.1} parent=1 // pred_fallthru
      _
    // Predicated region
    $region26: #{discriminator_forward.1} parent=1 // pred_check
      _
    $region27: #{discriminator_forward.1} parent=1 // pred_check_branch
      %54 = sbr.rel (0) target = $region29
    $region28: #{discriminator_forward.1} parent=1 // pred_region
      %55 = dma.done [#allocation6], 64
    $region29: #{discriminator_forward.1} parent=1 // pred_fallthru
      _
    // Predicated region
    $region30: #{discriminator_forward.1} parent=1 // pred_check
      _
    $region31: #{discriminator_forward.1} parent=1 // pred_check_branch
      %57 = sbr.rel (0) target = $region33
    $region32: #{discriminator_forward.1} parent=1 // pred_region
      %58 = dma.done [#allocation6], 64
    $region33: #{discriminator_forward.1} parent=1 // pred_fallthru
      _
    %v60 = vld [vmem:[%s0] sm:$0xff]
    %v61 = vld [vmem:[%s0 + $0x8] sm:$0xff]
    %v62 = vld [vmem:[%s0 + $0x10] sm:$0xff]
    %v63 = vld [vmem:[%s0 + $0x18] sm:$0xff]
    %v64 = vld [vmem:[%s0 + $0x20] sm:$0xff]
    %v65 = vld [vmem:[%s0 + $0x28] sm:$0xff]
    %v66 = vld [vmem:[%s0 + $0x30] sm:$0xff]
    %v67 = vpack.c.bf16 %v60, %v60
    %v68 = vpack.c.bf16 %v61, %v61
    %v69 = vpack.c.bf16 %v62, %v62
    %v70 = vpack.c.bf16 %v63, %v63
    %v71 = vpack.c.bf16 %v64, %v64
    %v72 = vpack.c.bf16 %v65, %v65
    %v73 = vpack.c.bf16 %v66, %v66
    %v74 = vld [vmem:[#allocation3] sm:$0xff]
    %v75 = vld [vmem:[#allocation3 + $0x8] sm:$0xff]
    %v76 = vld [vmem:[#allocation3 + $0x10] sm:$0xff]
    %v77 = vld [vmem:[#allocation3 + $0x18] sm:$0xff]
    %v78 = vld [vmem:[#allocation3 + $0x20] sm:$0xff]
    %v79 = vld [vmem:[#allocation3 + $0x28] sm:$0xff]
    %v80 = vld [vmem:[#allocation3 + $0x30] sm:$0xff]
    %v81 = vld [vmem:[#allocation3 + $0x38] sm:$0xff]
    %v82 = vld [vmem:[#allocation3 + $0x40] sm:$0xff]
    %v83 = vld [vmem:[#allocation3 + $0x48] sm:$0xff]
    %v84 = vld [vmem:[#allocation3 + $0x50] sm:$0xff]
    %v85 = vld [vmem:[#allocation3 + $0x58] sm:$0xff]
    %v86 = vld [vmem:[#allocation3 + $0x60] sm:$0xff]
    %v87 = vld [vmem:[#allocation3 + $0x68] sm:$0xff]
    %v88 = vld [vmem:[#allocation3 + $0x70] sm:$0xff]
    %v89 = vld [vmem:[#allocation3 + $0x78] sm:$0xff]
    %v90 = vld [vmem:[#allocation3 + $0x80] sm:$0xff]
    %v91 = vld [vmem:[#allocation3 + $0x88] sm:$0xff]
    %v92 = vld [vmem:[#allocation3 + $0x90] sm:$0xff]
    %v93 = vld [vmem:[#allocation3 + $0x98] sm:$0xff]
    %v94 = vld [vmem:[#allocation3 + $0xa0] sm:$0xff]
    %v95 = vld [vmem:[#allocation3 + $0xa8] sm:$0xff]
    %v96 = vld [vmem:[#allocation3 + $0xb0] sm:$0xff]
    %v97 = vld [vmem:[#allocation3 + $0xb8] sm:$0xff]
    %v98 = vld [vmem:[#allocation3 + $0xc0] sm:$0xff]
    %v99 = vld [vmem:[#allocation3 + $0xc8] sm:$0xff]
    %v100 = vld [vmem:[#allocation3 + $0xd0] sm:$0xff]
    %v101 = vld [vmem:[#allocation3 + $0xd8] sm:$0xff]
    %v102 = vld [vmem:[#allocation3 + $0xe0] sm:$0xff]
    %v103 = vld [vmem:[#allocation3 + $0xe8] sm:$0xff]
    %v104 = vld [vmem:[#allocation3 + $0xf0] sm:$0xff]
    %v105 = vld [vmem:[#allocation3 + $0xf8] sm:$0xff]
    %v106 = vld [vmem:[#allocation3 + $0x100] sm:$0xff]
    %v107 = vld [vmem:[#allocation3 + $0x108] sm:$0xff]
    %v108 = vld [vmem:[#allocation3 + $0x110] sm:$0xff]
    %v109 = vld [vmem:[#allocation3 + $0x118] sm:$0xff]
    %v110 = vld [vmem:[#allocation3 + $0x120] sm:$0xff]
    %v111 = vld [vmem:[#allocation3 + $0x128] sm:$0xff]
    %v112 = vld [vmem:[#allocation3 + $0x130] sm:$0xff]
    %v113 = vld [vmem:[#allocation3 + $0x138] sm:$0xff]
    %v114 = vld [vmem:[#allocation3 + $0x140] sm:$0xff]
    %v115 = vld [vmem:[#allocation3 + $0x148] sm:$0xff]
    %v116 = vld [vmem:[#allocation3 + $0x150] sm:$0xff]
    %v117 = vld [vmem:[#allocation3 + $0x158] sm:$0xff]
    %v118 = vld [vmem:[#allocation3 + $0x160] sm:$0xff]
    %v119 = vld [vmem:[#allocation3 + $0x168] sm:$0xff]
    %v120 = vld [vmem:[#allocation3 + $0x170] sm:$0xff]
    %v121 = vld [vmem:[#allocation3 + $0x178] sm:$0xff]
    %v122 = vld [vmem:[#allocation3 + $0x180] sm:$0xff]
    %v123 = vld [vmem:[#allocation3 + $0x188] sm:$0xff]
    %v124 = vld [vmem:[#allocation3 + $0x190] sm:$0xff]
    %v125 = vld [vmem:[#allocation3 + $0x198] sm:$0xff]
    %v126 = vld [vmem:[#allocation3 + $0x1a0] sm:$0xff]
    %v127 = vld [vmem:[#allocation3 + $0x1a8] sm:$0xff]
    %v128 = vld [vmem:[#allocation3 + $0x1b0] sm:$0xff]
    %v129 = vld [vmem:[#allocation3 + $0x1b8] sm:$0xff]
    %v130 = vld [vmem:[#allocation3 + $0x1c0] sm:$0xff]
    %v131 = vld [vmem:[#allocation3 + $0x1c8] sm:$0xff]
    %v132 = vld [vmem:[#allocation3 + $0x1d0] sm:$0xff]
    %v133 = vld [vmem:[#allocation3 + $0x1d8] sm:$0xff]
    %v134 = vld [vmem:[#allocation3 + $0x1e0] sm:$0xff]
    %v135 = vld [vmem:[#allocation3 + $0x1e8] sm:$0xff]
    %v136 = vld [vmem:[#allocation3 + $0x1f0] sm:$0xff]
    %v137 = vld [vmem:[#allocation3 + $0x1f8] sm:$0xff]
    %v138 = vld [vmem:[#allocation3 + $0x200] sm:$0xff]
    %v139 = vld [vmem:[#allocation3 + $0x208] sm:$0xff]
    %v140 = vld [vmem:[#allocation3 + $0x210] sm:$0xff]
    %v141 = vld [vmem:[#allocation3 + $0x218] sm:$0xff]
    %v142 = vld [vmem:[#allocation3 + $0x220] sm:$0xff]
    %v143 = vld [vmem:[#allocation3 + $0x228] sm:$0xff]
    %v144 = vld [vmem:[#allocation3 + $0x230] sm:$0xff]
    %v145 = vld [vmem:[#allocation3 + $0x238] sm:$0xff]
    %v146 = vld [vmem:[#allocation3 + $0x240] sm:$0xff]
    %v147 = vld [vmem:[#allocation3 + $0x248] sm:$0xff]
    %v148 = vld [vmem:[#allocation3 + $0x250] sm:$0xff]
    %v149 = vld [vmem:[#allocation3 + $0x258] sm:$0xff]
    %v150 = vld [vmem:[#allocation3 + $0x260] sm:$0xff]
    %v151 = vld [vmem:[#allocation3 + $0x268] sm:$0xff]
    %v152 = vld [vmem:[#allocation3 + $0x270] sm:$0xff]
    %v153 = vld [vmem:[#allocation3 + $0x278] sm:$0xff]
    %v154 = vld [vmem:[#allocation3 + $0x280] sm:$0xff]
    %v155 = vld [vmem:[#allocation3 + $0x288] sm:$0xff]
    %v156 = vld [vmem:[#allocation3 + $0x290] sm:$0xff]
    %v157 = vld [vmem:[#allocation3 + $0x298] sm:$0xff]
    %v158 = vld [vmem:[#allocation3 + $0x2a0] sm:$0xff]
    %v159 = vld [vmem:[#allocation3 + $0x2a8] sm:$0xff]
    %v160 = vld [vmem:[#allocation3 + $0x2b0] sm:$0xff]
    %v161 = vld [vmem:[#allocation3 + $0x2b8] sm:$0xff]
    %v162 = vld [vmem:[#allocation3 + $0x2c0] sm:$0xff]
    %v163 = vld [vmem:[#allocation3 + $0x2c8] sm:$0xff]
    %v164 = vld [vmem:[#allocation3 + $0x2d0] sm:$0xff]
    %v165 = vld [vmem:[#allocation3 + $0x2d8] sm:$0xff]
    %v166 = vld [vmem:[#allocation3 + $0x2e0] sm:$0xff]
    %v167 = vld [vmem:[#allocation3 + $0x2e8] sm:$0xff]
    %v168 = vld [vmem:[#allocation3 + $0x2f0] sm:$0xff]
    %v169 = vld [vmem:[#allocation3 + $0x2f8] sm:$0xff]
    %v170 = vld [vmem:[#allocation3 + $0x300] sm:$0xff]
    %v171 = vld [vmem:[#allocation3 + $0x308] sm:$0xff]
    %v172 = vld [vmem:[#allocation3 + $0x310] sm:$0xff]
    %v173 = vld [vmem:[#allocation3 + $0x318] sm:$0xff]
    %v174 = vld [vmem:[#allocation3 + $0x320] sm:$0xff]
    %v175 = vld [vmem:[#allocation3 + $0x328] sm:$0xff]
    %v176 = vld [vmem:[#allocation3 + $0x330] sm:$0xff]
    %v177 = vld [vmem:[#allocation3 + $0x338] sm:$0xff]
    %v178 = vld [vmem:[#allocation3 + $0x340] sm:$0xff]
    %v179 = vld [vmem:[#allocation3 + $0x348] sm:$0xff]
    %v180 = vld [vmem:[#allocation3 + $0x350] sm:$0xff]
    %v181 = vld [vmem:[#allocation3 + $0x358] sm:$0xff]
    %v182 = vld [vmem:[#allocation3 + $0x360] sm:$0xff]
    %v183 = vld [vmem:[#allocation3 + $0x368] sm:$0xff]
    %v184 = vld [vmem:[#allocation3 + $0x370] sm:$0xff]
    %v185 = vld [vmem:[#allocation3 + $0x378] sm:$0xff]
    %v186 = vld [vmem:[#allocation3 + $0x380] sm:$0xff]
    %v187 = vld [vmem:[#allocation3 + $0x388] sm:$0xff]
    %v188 = vld [vmem:[#allocation3 + $0x390] sm:$0xff]
    %v189 = vld [vmem:[#allocation3 + $0x398] sm:$0xff]
    %v190 = vld [vmem:[#allocation3 + $0x3a0] sm:$0xff]
    %v191 = vld [vmem:[#allocation3 + $0x3a8] sm:$0xff]
    %v192 = vld [vmem:[#allocation3 + $0x3b0] sm:$0xff]
    %v193 = vld [vmem:[#allocation3 + $0x3b8] sm:$0xff]
    %v194 = vld [vmem:[#allocation3 + $0x3c0] sm:$0xff]
    %v195 = vld [vmem:[#allocation3 + $0x3c8] sm:$0xff]
    %v196 = vld [vmem:[#allocation3 + $0x3d0] sm:$0xff]
    %v197 = vld [vmem:[#allocation3 + $0x3d8] sm:$0xff]
    %v198 = vld [vmem:[#allocation3 + $0x3e0] sm:$0xff]
    %v199 = vld [vmem:[#allocation3 + $0x3e8] sm:$0xff]
    %v200 = vld [vmem:[#allocation3 + $0x3f0] sm:$0xff]
    %v201 = vld [vmem:[#allocation3 + $0x3f8] sm:$0xff]
    %v202 = vld [vmem:[#allocation3 + $0x400] sm:$0xff]
    %v203 = vld [vmem:[#allocation3 + $0x408] sm:$0xff]
    %v204 = vld [vmem:[#allocation3 + $0x410] sm:$0xff]
    %v205 = vld [vmem:[#allocation3 + $0x418] sm:$0xff]
    %v206 = vld [vmem:[#allocation3 + $0x420] sm:$0xff]
    %v207 = vld [vmem:[#allocation3 + $0x428] sm:$0xff]
    %v208 = vld [vmem:[#allocation3 + $0x430] sm:$0xff]
    %v209 = vld [vmem:[#allocation3 + $0x438] sm:$0xff]
    %v210 = vld [vmem:[#allocation3 + $0x440] sm:$0xff]
    %v211 = vld [vmem:[#allocation3 + $0x448] sm:$0xff]
    %v212 = vld [vmem:[#allocation3 + $0x450] sm:$0xff]
    %v213 = vld [vmem:[#allocation3 + $0x458] sm:$0xff]
    %v214 = vld [vmem:[#allocation3 + $0x460] sm:$0xff]
    %v215 = vld [vmem:[#allocation3 + $0x468] sm:$0xff]
    %v216 = vld [vmem:[#allocation3 + $0x470] sm:$0xff]
    %v217 = vld [vmem:[#allocation3 + $0x478] sm:$0xff]
    %v218 = vld [vmem:[#allocation3 + $0x480] sm:$0xff]
    %v219 = vld [vmem:[#allocation3 + $0x488] sm:$0xff]
    %v220 = vld [vmem:[#allocation3 + $0x490] sm:$0xff]
    %v221 = vld [vmem:[#allocation3 + $0x498] sm:$0xff]
    %v222 = vld [vmem:[#allocation3 + $0x4a0] sm:$0xff]
    %v223 = vld [vmem:[#allocation3 + $0x4a8] sm:$0xff]
    %v224 = vld [vmem:[#allocation3 + $0x4b0] sm:$0xff]
    %v225 = vld [vmem:[#allocation3 + $0x4b8] sm:$0xff]
    %v226 = vld [vmem:[#allocation3 + $0x4c0] sm:$0xff]
    %v227 = vld [vmem:[#allocation3 + $0x4c8] sm:$0xff]
    %v228 = vld [vmem:[#allocation3 + $0x4d0] sm:$0xff]
    %v229 = vld [vmem:[#allocation3 + $0x4d8] sm:$0xff]
    %v230 = vld [vmem:[#allocation3 + $0x4e0] sm:$0xff]
    %v231 = vld [vmem:[#allocation3 + $0x4e8] sm:$0xff]
    %v232 = vld [vmem:[#allocation3 + $0x4f0] sm:$0xff]
    %v233 = vld [vmem:[#allocation3 + $0x4f8] sm:$0xff]
    %v234 = vld [vmem:[#allocation3 + $0x500] sm:$0xff]
    %v235 = vld [vmem:[#allocation3 + $0x508] sm:$0xff]
    %v236 = vld [vmem:[#allocation3 + $0x510] sm:$0xff]
    %v237 = vld [vmem:[#allocation3 + $0x518] sm:$0xff]
    %v238 = vld [vmem:[#allocation3 + $0x520] sm:$0xff]
    %v239 = vld [vmem:[#allocation3 + $0x528] sm:$0xff]
    %v240 = vld [vmem:[#allocation3 + $0x530] sm:$0xff]
    %v241 = vld [vmem:[#allocation3 + $0x538] sm:$0xff]
    %v242 = vld [vmem:[#allocation3 + $0x540] sm:$0xff]
    %v243 = vld [vmem:[#allocation3 + $0x548] sm:$0xff]
    %v244 = vld [vmem:[#allocation3 + $0x550] sm:$0xff]
    %v245 = vld [vmem:[#allocation3 + $0x558] sm:$0xff]
    %v246 = vld [vmem:[#allocation3 + $0x560] sm:$0xff]
    %v247 = vld [vmem:[#allocation3 + $0x568] sm:$0xff]
    %v248 = vld [vmem:[#allocation3 + $0x570] sm:$0xff]
    %v249 = vld [vmem:[#allocation3 + $0x578] sm:$0xff]
    %v250 = vld [vmem:[#allocation3 + $0x580] sm:$0xff]
    %v251 = vld [vmem:[#allocation3 + $0x588] sm:$0xff]
    %v252 = vld [vmem:[#allocation3 + $0x590] sm:$0xff]
    %v253 = vld [vmem:[#allocation3 + $0x598] sm:$0xff]
    %v254 = vld [vmem:[#allocation3 + $0x5a0] sm:$0xff]
    %v255 = vld [vmem:[#allocation3 + $0x5a8] sm:$0xff]
    %v256 = vld [vmem:[#allocation3 + $0x5b0] sm:$0xff]
    %v257 = vld [vmem:[#allocation3 + $0x5b8] sm:$0xff]
    %v258 = vld [vmem:[#allocation3 + $0x5c0] sm:$0xff]
    %v259 = vld [vmem:[#allocation3 + $0x5c8] sm:$0xff]
    %v260 = vld [vmem:[#allocation3 + $0x5d0] sm:$0xff]
    %v261 = vld [vmem:[#allocation3 + $0x5d8] sm:$0xff]
    %v262 = vld [vmem:[#allocation3 + $0x5e0] sm:$0xff]
    %v263 = vld [vmem:[#allocation3 + $0x5e8] sm:$0xff]
    %v264 = vld [vmem:[#allocation3 + $0x5f0] sm:$0xff]
    %v265 = vld [vmem:[#allocation3 + $0x5f8] sm:$0xff]
    %v266 = vld [vmem:[#allocation3 + $0x600] sm:$0xff]
    %v267 = vld [vmem:[#allocation3 + $0x608] sm:$0xff]
    %v268 = vld [vmem:[#allocation3 + $0x610] sm:$0xff]
    %v269 = vld [vmem:[#allocation3 + $0x618] sm:$0xff]
    %v270 = vld [vmem:[#allocation3 + $0x620] sm:$0xff]
    %v271 = vld [vmem:[#allocation3 + $0x628] sm:$0xff]
    %v272 = vld [vmem:[#allocation3 + $0x630] sm:$0xff]
    %v273 = vld [vmem:[#allocation3 + $0x638] sm:$0xff]
    %v274 = vld [vmem:[#allocation3 + $0x640] sm:$0xff]
    %v275 = vld [vmem:[#allocation3 + $0x648] sm:$0xff]
    %v276 = vld [vmem:[#allocation3 + $0x650] sm:$0xff]
    %v277 = vld [vmem:[#allocation3 + $0x658] sm:$0xff]
    %v278 = vld [vmem:[#allocation3 + $0x660] sm:$0xff]
    %v279 = vld [vmem:[#allocation3 + $0x668] sm:$0xff]
    %v280 = vld [vmem:[#allocation3 + $0x670] sm:$0xff]
    %v281 = vld [vmem:[#allocation3 + $0x678] sm:$0xff]
    %v282 = vld [vmem:[#allocation3 + $0x680] sm:$0xff]
    %v283 = vld [vmem:[#allocation3 + $0x688] sm:$0xff]
    %v284 = vld [vmem:[#allocation3 + $0x690] sm:$0xff]
    %v285 = vld [vmem:[#allocation3 + $0x698] sm:$0xff]
    %v286 = vld [vmem:[#allocation3 + $0x6a0] sm:$0xff]
    %v287 = vld [vmem:[#allocation3 + $0x6a8] sm:$0xff]
    %v288 = vld [vmem:[#allocation3 + $0x6b0] sm:$0xff]
    %v289 = vld [vmem:[#allocation3 + $0x6b8] sm:$0xff]
    %v290 = vld [vmem:[#allocation3 + $0x6c0] sm:$0xff]
    %v291 = vld [vmem:[#allocation3 + $0x6c8] sm:$0xff]
    %v292 = vld [vmem:[#allocation3 + $0x6d0] sm:$0xff]
    %v293 = vld [vmem:[#allocation3 + $0x6d8] sm:$0xff]
    %v294 = vld [vmem:[#allocation3 + $0x6e0] sm:$0xff]
    %v295 = vld [vmem:[#allocation3 + $0x6e8] sm:$0xff]
    %v296 = vld [vmem:[#allocation3 + $0x6f0] sm:$0xff]
    %v297 = vld [vmem:[#allocation3 + $0x6f8] sm:$0xff]
    %v298 = vld [vmem:[#allocation3 + $0x700] sm:$0xff]
    %v299 = vld [vmem:[#allocation3 + $0x708] sm:$0xff]
    %v300 = vld [vmem:[#allocation3 + $0x710] sm:$0xff]
    %v301 = vld [vmem:[#allocation3 + $0x718] sm:$0xff]
    %v302 = vld [vmem:[#allocation3 + $0x720] sm:$0xff]
    %v303 = vld [vmem:[#allocation3 + $0x728] sm:$0xff]
    %v304 = vld [vmem:[#allocation3 + $0x730] sm:$0xff]
    %v305 = vld [vmem:[#allocation3 + $0x738] sm:$0xff]
    %v306 = vld [vmem:[#allocation3 + $0x740] sm:$0xff]
    %v307 = vld [vmem:[#allocation3 + $0x748] sm:$0xff]
    %v308 = vld [vmem:[#allocation3 + $0x750] sm:$0xff]
    %v309 = vld [vmem:[#allocation3 + $0x758] sm:$0xff]
    %v310 = vld [vmem:[#allocation3 + $0x760] sm:$0xff]
    %v311 = vld [vmem:[#allocation3 + $0x768] sm:$0xff]
    %v312 = vld [vmem:[#allocation3 + $0x770] sm:$0xff]
    %v313 = vld [vmem:[#allocation3 + $0x778] sm:$0xff]
    %v314 = vld [vmem:[#allocation3 + $0x780] sm:$0xff]
    %v315 = vld [vmem:[#allocation3 + $0x788] sm:$0xff]
    %v316 = vld [vmem:[#allocation3 + $0x790] sm:$0xff]
    %v317 = vld [vmem:[#allocation3 + $0x798] sm:$0xff]
    %v318 = vld [vmem:[#allocation3 + $0x7a0] sm:$0xff]
    %v319 = vld [vmem:[#allocation3 + $0x7a8] sm:$0xff]
    %v320 = vld [vmem:[#allocation3 + $0x7b0] sm:$0xff]
    %v321 = vld [vmem:[#allocation3 + $0x7b8] sm:$0xff]
    %v322 = vld [vmem:[#allocation3 + $0x7c0] sm:$0xff]
    %v323 = vld [vmem:[#allocation3 + $0x7c8] sm:$0xff]
    %v324 = vld [vmem:[#allocation3 + $0x7d0] sm:$0xff]
    %v325 = vld [vmem:[#allocation3 + $0x7d8] sm:$0xff]
    %v326 = vld [vmem:[#allocation3 + $0x7e0] sm:$0xff]
    %v327 = vld [vmem:[#allocation3 + $0x7e8] sm:$0xff]
    %v328 = vld [vmem:[#allocation3 + $0x7f0] sm:$0xff]
    %v329 = vld [vmem:[#allocation3 + $0x7f8] sm:$0xff]
    %v330 = vld [vmem:[#allocation3 + $0x800] sm:$0xff]
    %v331 = vld [vmem:[#allocation3 + $0x808] sm:$0xff]
    %v332 = vld [vmem:[#allocation3 + $0x810] sm:$0xff]
    %v333 = vld [vmem:[#allocation3 + $0x818] sm:$0xff]
    %v334 = vld [vmem:[#allocation3 + $0x820] sm:$0xff]
    %v335 = vld [vmem:[#allocation3 + $0x828] sm:$0xff]
    %v336 = vld [vmem:[#allocation3 + $0x830] sm:$0xff]
    %v337 = vld [vmem:[#allocation3 + $0x838] sm:$0xff]
    %v338 = vld [vmem:[#allocation3 + $0x840] sm:$0xff]
    %v339 = vld [vmem:[#allocation3 + $0x848] sm:$0xff]
    %v340 = vld [vmem:[#allocation3 + $0x850] sm:$0xff]
    %v341 = vld [vmem:[#allocation3 + $0x858] sm:$0xff]
    %v342 = vld [vmem:[#allocation3 + $0x860] sm:$0xff]
    %v343 = vld [vmem:[#allocation3 + $0x868] sm:$0xff]
    %v344 = vld [vmem:[#allocation3 + $0x870] sm:$0xff]
    %v345 = vld [vmem:[#allocation3 + $0x878] sm:$0xff]
    %v346 = vld [vmem:[#allocation3 + $0x880] sm:$0xff]
    %v347 = vld [vmem:[#allocation3 + $0x888] sm:$0xff]
    %v348 = vld [vmem:[#allocation3 + $0x890] sm:$0xff]
    %v349 = vld [vmem:[#allocation3 + $0x898] sm:$0xff]
    %v350 = vld [vmem:[#allocation3 + $0x8a0] sm:$0xff]
    %v351 = vld [vmem:[#allocation3 + $0x8a8] sm:$0xff]
    %v352 = vld [vmem:[#allocation3 + $0x8b0] sm:$0xff]
    %v353 = vld [vmem:[#allocation3 + $0x8b8] sm:$0xff]
    %v354 = vld [vmem:[#allocation3 + $0x8c0] sm:$0xff]
    %v355 = vld [vmem:[#allocation3 + $0x8c8] sm:$0xff]
    %v356 = vld [vmem:[#allocation3 + $0x8d0] sm:$0xff]
    %v357 = vld [vmem:[#allocation3 + $0x8d8] sm:$0xff]
    %v358 = vld [vmem:[#allocation3 + $0x8e0] sm:$0xff]
    %v359 = vld [vmem:[#allocation3 + $0x8e8] sm:$0xff]
    %v360 = vld [vmem:[#allocation3 + $0x8f0] sm:$0xff]
    %v361 = vld [vmem:[#allocation3 + $0x8f8] sm:$0xff]
    %v362 = vld [vmem:[#allocation3 + $0x900] sm:$0xff]
    %v363 = vld [vmem:[#allocation3 + $0x908] sm:$0xff]
    %v364 = vld [vmem:[#allocation3 + $0x910] sm:$0xff]
    %v365 = vld [vmem:[#allocation3 + $0x918] sm:$0xff]
    %v366 = vld [vmem:[#allocation3 + $0x920] sm:$0xff]
    %v367 = vld [vmem:[#allocation3 + $0x928] sm:$0xff]
    %v368 = vld [vmem:[#allocation3 + $0x930] sm:$0xff]
    %v369 = vld [vmem:[#allocation3 + $0x938] sm:$0xff]
    %v370 = vld [vmem:[#allocation3 + $0x940] sm:$0xff]
    %v371 = vld [vmem:[#allocation3 + $0x948] sm:$0xff]
    %v372 = vld [vmem:[#allocation3 + $0x950] sm:$0xff]
    %v373 = vld [vmem:[#allocation3 + $0x958] sm:$0xff]
    %v374 = vld [vmem:[#allocation3 + $0x960] sm:$0xff]
    %v375 = vld [vmem:[#allocation3 + $0x968] sm:$0xff]
    %v376 = vld [vmem:[#allocation3 + $0x970] sm:$0xff]
    %v377 = vld [vmem:[#allocation3 + $0x978] sm:$0xff]
    %v378 = vld [vmem:[#allocation3 + $0x980] sm:$0xff]
    %v379 = vld [vmem:[#allocation3 + $0x988] sm:$0xff]
    %v380 = vld [vmem:[#allocation3 + $0x990] sm:$0xff]
    %v381 = vld [vmem:[#allocation3 + $0x998] sm:$0xff]
    %v382 = vld [vmem:[#allocation3 + $0x9a0] sm:$0xff]
    %v383 = vld [vmem:[#allocation3 + $0x9a8] sm:$0xff]
    %v384 = vld [vmem:[#allocation3 + $0x9b0] sm:$0xff]
    %v385 = vld [vmem:[#allocation3 + $0x9b8] sm:$0xff]
    %v386 = vld [vmem:[#allocation3 + $0x9c0] sm:$0xff]
    %v387 = vld [vmem:[#allocation3 + $0x9c8] sm:$0xff]
    %v388 = vld [vmem:[#allocation3 + $0x9d0] sm:$0xff]
    %v389 = vld [vmem:[#allocation3 + $0x9d8] sm:$0xff]
    %v390 = vld [vmem:[#allocation3 + $0x9e0] sm:$0xff]
    %v391 = vld [vmem:[#allocation3 + $0x9e8] sm:$0xff]
    %v392 = vld [vmem:[#allocation3 + $0x9f0] sm:$0xff]
    %v393 = vld [vmem:[#allocation3 + $0x9f8] sm:$0xff]
    %v394 = vld [vmem:[#allocation3 + $0xa00] sm:$0xff]
    %v395 = vld [vmem:[#allocation3 + $0xa08] sm:$0xff]
    %v396 = vld [vmem:[#allocation3 + $0xa10] sm:$0xff]
    %v397 = vld [vmem:[#allocation3 + $0xa18] sm:$0xff]
    %v398 = vld [vmem:[#allocation3 + $0xa20] sm:$0xff]
    %v399 = vld [vmem:[#allocation3 + $0xa28] sm:$0xff]
    %v400 = vld [vmem:[#allocation3 + $0xa30] sm:$0xff]
    %v401 = vld [vmem:[#allocation3 + $0xa38] sm:$0xff]
    %v402 = vld [vmem:[#allocation3 + $0xa40] sm:$0xff]
    %v403 = vld [vmem:[#allocation3 + $0xa48] sm:$0xff]
    %v404 = vld [vmem:[#allocation3 + $0xa50] sm:$0xff]
    %v405 = vld [vmem:[#allocation3 + $0xa58] sm:$0xff]
    %v406 = vld [vmem:[#allocation3 + $0xa60] sm:$0xff]
    %v407 = vld [vmem:[#allocation3 + $0xa68] sm:$0xff]
    %v408 = vld [vmem:[#allocation3 + $0xa70] sm:$0xff]
    %v409 = vld [vmem:[#allocation3 + $0xa78] sm:$0xff]
    %v410 = vld [vmem:[#allocation3 + $0xa80] sm:$0xff]
    %v411 = vld [vmem:[#allocation3 + $0xa88] sm:$0xff]
    %v412 = vld [vmem:[#allocation3 + $0xa90] sm:$0xff]
    %v413 = vld [vmem:[#allocation3 + $0xa98] sm:$0xff]
    %v414 = vld [vmem:[#allocation3 + $0xaa0] sm:$0xff]
    %v415 = vld [vmem:[#allocation3 + $0xaa8] sm:$0xff]
    %v416 = vld [vmem:[#allocation3 + $0xab0] sm:$0xff]
    %v417 = vld [vmem:[#allocation3 + $0xab8] sm:$0xff]
    %v418 = vld [vmem:[#allocation3 + $0xac0] sm:$0xff]
    %v419 = vld [vmem:[#allocation3 + $0xac8] sm:$0xff]
    %v420 = vld [vmem:[#allocation3 + $0xad0] sm:$0xff]
    %v421 = vld [vmem:[#allocation3 + $0xad8] sm:$0xff]
    %v422 = vld [vmem:[#allocation3 + $0xae0] sm:$0xff]
    %v423 = vld [vmem:[#allocation3 + $0xae8] sm:$0xff]
    %v424 = vld [vmem:[#allocation3 + $0xaf0] sm:$0xff]
    %v425 = vld [vmem:[#allocation3 + $0xaf8] sm:$0xff]
    %v426 = vld [vmem:[#allocation3 + $0xb00] sm:$0xff]
    %v427 = vld [vmem:[#allocation3 + $0xb08] sm:$0xff]
    %v428 = vld [vmem:[#allocation3 + $0xb10] sm:$0xff]
    %v429 = vld [vmem:[#allocation3 + $0xb18] sm:$0xff]
    %v430 = vld [vmem:[#allocation3 + $0xb20] sm:$0xff]
    %v431 = vld [vmem:[#allocation3 + $0xb28] sm:$0xff]
    %v432 = vld [vmem:[#allocation3 + $0xb30] sm:$0xff]
    %v433 = vld [vmem:[#allocation3 + $0xb38] sm:$0xff]
    %v434 = vld [vmem:[#allocation3 + $0xb40] sm:$0xff]
    %v435 = vld [vmem:[#allocation3 + $0xb48] sm:$0xff]
    %v436 = vld [vmem:[#allocation3 + $0xb50] sm:$0xff]
    %v437 = vld [vmem:[#allocation3 + $0xb58] sm:$0xff]
    %v438 = vld [vmem:[#allocation3 + $0xb60] sm:$0xff]
    %v439 = vld [vmem:[#allocation3 + $0xb68] sm:$0xff]
    %v440 = vld [vmem:[#allocation3 + $0xb70] sm:$0xff]
    %v441 = vld [vmem:[#allocation3 + $0xb78] sm:$0xff]
    %v442 = vld [vmem:[#allocation3 + $0xb80] sm:$0xff]
    %v443 = vld [vmem:[#allocation3 + $0xb88] sm:$0xff]
    %v444 = vld [vmem:[#allocation3 + $0xb90] sm:$0xff]
    %v445 = vld [vmem:[#allocation3 + $0xb98] sm:$0xff]
    %v446 = vld [vmem:[#allocation3 + $0xba0] sm:$0xff]
    %v447 = vld [vmem:[#allocation3 + $0xba8] sm:$0xff]
    %v448 = vld [vmem:[#allocation3 + $0xbb0] sm:$0xff]
    %v449 = vld [vmem:[#allocation3 + $0xbb8] sm:$0xff]
    %v450 = vld [vmem:[#allocation3 + $0xbc0] sm:$0xff]
    %v451 = vld [vmem:[#allocation3 + $0xbc8] sm:$0xff]
    %v452 = vld [vmem:[#allocation3 + $0xbd0] sm:$0xff]
    %v453 = vld [vmem:[#allocation3 + $0xbd8] sm:$0xff]
    %v454 = vld [vmem:[#allocation3 + $0xbe0] sm:$0xff]
    %v455 = vld [vmem:[#allocation3 + $0xbe8] sm:$0xff]
    %v456 = vld [vmem:[#allocation3 + $0xbf0] sm:$0xff]
    %v457 = vld [vmem:[#allocation3 + $0xbf8] sm:$0xff]
    %v458 = vld [vmem:[#allocation3 + $0xc00] sm:$0xff]
    %v459 = vld [vmem:[#allocation3 + $0xc08] sm:$0xff]
    %v460 = vld [vmem:[#allocation3 + $0xc10] sm:$0xff]
    %v461 = vld [vmem:[#allocation3 + $0xc18] sm:$0xff]
    %v462 = vld [vmem:[#allocation3 + $0xc20] sm:$0xff]
    %v463 = vld [vmem:[#allocation3 + $0xc28] sm:$0xff]
    %v464 = vld [vmem:[#allocation3 + $0xc30] sm:$0xff]
    %v465 = vld [vmem:[#allocation3 + $0xc38] sm:$0xff]
    %v466 = vpack.c.bf16 %v78, %v74
    %v467 = vpack.c.bf16 %v79, %v75
    %v468 = vpack.c.bf16 %v80, %v76
    %v469 = vpack.c.bf16 %v81, %v77
    %v470 = vpack.c.bf16 %v86, %v82
    %v471 = vpack.c.bf16 %v87, %v83
    %v472 = vpack.c.bf16 %v88, %v84
    %v473 = vpack.c.bf16 %v89, %v85
    %v474 = vpack.c.bf16 %v94, %v90
    %v475 = vpack.c.bf16 %v95, %v91
    %v476 = vpack.c.bf16 %v96, %v92
    %v477 = vpack.c.bf16 %v97, %v93
    %v478 = vpack.c.bf16 %v102, %v98
    %v479 = vpack.c.bf16 %v103, %v99
    %v480 = vpack.c.bf16 %v104, %v100
    %v481 = vpack.c.bf16 %v105, %v101
    %v482 = vpack.c.bf16 %v110, %v106
    %v483 = vpack.c.bf16 %v111, %v107
    %v484 = vpack.c.bf16 %v112, %v108
    %v485 = vpack.c.bf16 %v113, %v109
    %v486 = vpack.c.bf16 %v118, %v114
    %v487 = vpack.c.bf16 %v119, %v115
    %v488 = vpack.c.bf16 %v120, %v116
    %v489 = vpack.c.bf16 %v121, %v117
    %v490 = vpack.c.bf16 %v126, %v122
    %v491 = vpack.c.bf16 %v127, %v123
    %v492 = vpack.c.bf16 %v128, %v124
    %v493 = vpack.c.bf16 %v129, %v125
    %v494 = vpack.c.bf16 %v134, %v130
    %v495 = vpack.c.bf16 %v135, %v131
    %v496 = vpack.c.bf16 %v136, %v132
    %v497 = vpack.c.bf16 %v137, %v133
    %v498 = vpack.c.bf16 %v142, %v138
    %v499 = vpack.c.bf16 %v143, %v139
    %v500 = vpack.c.bf16 %v144, %v140
    %v501 = vpack.c.bf16 %v145, %v141
    %v502 = vpack.c.bf16 %v150, %v146
    %v503 = vpack.c.bf16 %v151, %v147
    %v504 = vpack.c.bf16 %v152, %v148
    %v505 = vpack.c.bf16 %v153, %v149
    %v506 = vpack.c.bf16 %v158, %v154
    %v507 = vpack.c.bf16 %v159, %v155
    %v508 = vpack.c.bf16 %v160, %v156
    %v509 = vpack.c.bf16 %v161, %v157
    %v510 = vpack.c.bf16 %v166, %v162
    %v511 = vpack.c.bf16 %v167, %v163
    %v512 = vpack.c.bf16 %v168, %v164
    %v513 = vpack.c.bf16 %v169, %v165
    %v514 = vpack.c.bf16 %v174, %v170
    %v515 = vpack.c.bf16 %v175, %v171
    %v516 = vpack.c.bf16 %v176, %v172
    %v517 = vpack.c.bf16 %v177, %v173
    %v518 = vpack.c.bf16 %v182, %v178
    %v519 = vpack.c.bf16 %v183, %v179
    %v520 = vpack.c.bf16 %v184, %v180
    %v521 = vpack.c.bf16 %v185, %v181
    %v522 = vpack.c.bf16 %v190, %v186
    %v523 = vpack.c.bf16 %v191, %v187
    %v524 = vpack.c.bf16 %v192, %v188
    %v525 = vpack.c.bf16 %v193, %v189
    %v526 = vpack.c.bf16 %v198, %v194
    %v527 = vpack.c.bf16 %v199, %v195
    %v528 = vpack.c.bf16 %v200, %v196
    %v529 = vpack.c.bf16 %v201, %v197
    %v530 = vpack.c.bf16 %v206, %v202
    %v531 = vpack.c.bf16 %v207, %v203
    %v532 = vpack.c.bf16 %v208, %v204
    %v533 = vpack.c.bf16 %v209, %v205
    %v534 = vpack.c.bf16 %v214, %v210
    %v535 = vpack.c.bf16 %v215, %v211
    %v536 = vpack.c.bf16 %v216, %v212
    %v537 = vpack.c.bf16 %v217, %v213
    %v538 = vpack.c.bf16 %v222, %v218
    %v539 = vpack.c.bf16 %v223, %v219
    %v540 = vpack.c.bf16 %v224, %v220
    %v541 = vpack.c.bf16 %v225, %v221
    %v542 = vpack.c.bf16 %v230, %v226
    %v543 = vpack.c.bf16 %v231, %v227
    %v544 = vpack.c.bf16 %v232, %v228
    %v545 = vpack.c.bf16 %v233, %v229
    %v546 = vpack.c.bf16 %v238, %v234
    %v547 = vpack.c.bf16 %v239, %v235
    %v548 = vpack.c.bf16 %v240, %v236
    %v549 = vpack.c.bf16 %v241, %v237
    %v550 = vpack.c.bf16 %v246, %v242
    %v551 = vpack.c.bf16 %v247, %v243
    %v552 = vpack.c.bf16 %v248, %v244
    %v553 = vpack.c.bf16 %v249, %v245
    %v554 = vpack.c.bf16 %v254, %v250
    %v555 = vpack.c.bf16 %v255, %v251
    %v556 = vpack.c.bf16 %v256, %v252
    %v557 = vpack.c.bf16 %v257, %v253
    %v558 = vpack.c.bf16 %v262, %v258
    %v559 = vpack.c.bf16 %v263, %v259
    %v560 = vpack.c.bf16 %v264, %v260
    %v561 = vpack.c.bf16 %v265, %v261
    %v562 = vpack.c.bf16 %v270, %v266
    %v563 = vpack.c.bf16 %v271, %v267
    %v564 = vpack.c.bf16 %v272, %v268
    %v565 = vpack.c.bf16 %v273, %v269
    %v566 = vpack.c.bf16 %v278, %v274
    %v567 = vpack.c.bf16 %v279, %v275
    %v568 = vpack.c.bf16 %v280, %v276
    %v569 = vpack.c.bf16 %v281, %v277
    %v570 = vpack.c.bf16 %v286, %v282
    %v571 = vpack.c.bf16 %v287, %v283
    %v572 = vpack.c.bf16 %v288, %v284
    %v573 = vpack.c.bf16 %v289, %v285
    %v574 = vpack.c.bf16 %v294, %v290
    %v575 = vpack.c.bf16 %v295, %v291
    %v576 = vpack.c.bf16 %v296, %v292
    %v577 = vpack.c.bf16 %v297, %v293
    %v578 = vpack.c.bf16 %v302, %v298
    %v579 = vpack.c.bf16 %v303, %v299
    %v580 = vpack.c.bf16 %v304, %v300
    %v581 = vpack.c.bf16 %v305, %v301
    %v582 = vpack.c.bf16 %v310, %v306
    %v583 = vpack.c.bf16 %v311, %v307
    %v584 = vpack.c.bf16 %v312, %v308
    %v585 = vpack.c.bf16 %v313, %v309
    %v586 = vpack.c.bf16 %v318, %v314
    %v587 = vpack.c.bf16 %v319, %v315
    %v588 = vpack.c.bf16 %v320, %v316
    %v589 = vpack.c.bf16 %v321, %v317
    %v590 = vpack.c.bf16 %v326, %v322
    %v591 = vpack.c.bf16 %v327, %v323
    %v592 = vpack.c.bf16 %v328, %v324
    %v593 = vpack.c.bf16 %v329, %v325
    %v594 = vpack.c.bf16 %v334, %v330
    %v595 = vpack.c.bf16 %v335, %v331
    %v596 = vpack.c.bf16 %v336, %v332
    %v597 = vpack.c.bf16 %v337, %v333
    %v598 = vpack.c.bf16 %v342, %v338
    %v599 = vpack.c.bf16 %v343, %v339
    %v600 = vpack.c.bf16 %v344, %v340
    %v601 = vpack.c.bf16 %v345, %v341
    %v602 = vpack.c.bf16 %v350, %v346
    %v603 = vpack.c.bf16 %v351, %v347
    %v604 = vpack.c.bf16 %v352, %v348
    %v605 = vpack.c.bf16 %v353, %v349
    %v606 = vpack.c.bf16 %v358, %v354
    %v607 = vpack.c.bf16 %v359, %v355
    %v608 = vpack.c.bf16 %v360, %v356
    %v609 = vpack.c.bf16 %v361, %v357
    %v610 = vpack.c.bf16 %v366, %v362
    %v611 = vpack.c.bf16 %v367, %v363
    %v612 = vpack.c.bf16 %v368, %v364
    %v613 = vpack.c.bf16 %v369, %v365
    %v614 = vpack.c.bf16 %v374, %v370
    %v615 = vpack.c.bf16 %v375, %v371
    %v616 = vpack.c.bf16 %v376, %v372
    %v617 = vpack.c.bf16 %v377, %v373
    %v618 = vpack.c.bf16 %v382, %v378
    %v619 = vpack.c.bf16 %v383, %v379
    %v620 = vpack.c.bf16 %v384, %v380
    %v621 = vpack.c.bf16 %v385, %v381
    %v622 = vpack.c.bf16 %v390, %v386
    %v623 = vpack.c.bf16 %v391, %v387
    %v624 = vpack.c.bf16 %v392, %v388
    %v625 = vpack.c.bf16 %v393, %v389
    %v626 = vpack.c.bf16 %v398, %v394
    %v627 = vpack.c.bf16 %v399, %v395
    %v628 = vpack.c.bf16 %v400, %v396
    %v629 = vpack.c.bf16 %v401, %v397
    %v630 = vpack.c.bf16 %v406, %v402
    %v631 = vpack.c.bf16 %v407, %v403
    %v632 = vpack.c.bf16 %v408, %v404
    %v633 = vpack.c.bf16 %v409, %v405
    %v634 = vpack.c.bf16 %v414, %v410
    %v635 = vpack.c.bf16 %v415, %v411
    %v636 = vpack.c.bf16 %v416, %v412
    %v637 = vpack.c.bf16 %v417, %v413
    %v638 = vpack.c.bf16 %v422, %v418
    %v639 = vpack.c.bf16 %v423, %v419
    %v640 = vpack.c.bf16 %v424, %v420
    %v641 = vpack.c.bf16 %v425, %v421
    %v642 = vpack.c.bf16 %v430, %v426
    %v643 = vpack.c.bf16 %v431, %v427
    %v644 = vpack.c.bf16 %v432, %v428
    %v645 = vpack.c.bf16 %v433, %v429
    %v646 = vpack.c.bf16 %v438, %v434
    %v647 = vpack.c.bf16 %v439, %v435
    %v648 = vpack.c.bf16 %v440, %v436
    %v649 = vpack.c.bf16 %v441, %v437
    %v650 = vpack.c.bf16 %v446, %v442
    %v651 = vpack.c.bf16 %v447, %v443
    %v652 = vpack.c.bf16 %v448, %v444
    %v653 = vpack.c.bf16 %v449, %v445
    %v654 = vpack.c.bf16 %v454, %v450
    %v655 = vpack.c.bf16 %v455, %v451
    %v656 = vpack.c.bf16 %v456, %v452
    %v657 = vpack.c.bf16 %v457, %v453
    %v658 = vpack.c.bf16 %v462, %v458
    %v659 = vpack.c.bf16 %v463, %v459
    %v660 = vpack.c.bf16 %v464, %v460
    %v661 = vpack.c.bf16 %v465, %v461
    %v662 = vld [vmem:[#allocation5] sm:$0xf]
    %v664 = vlaneseq
    %v665 = vshrl.u32 %v664, 7
    %v666 = vsub.s32 0, %v665
    %v667 = vrot.slane %v662, %v666
    %v668 = vlaneseq
    %v669 = vshrl.u32 %v668, 7
    %v670 = vsub.s32 1, %v669
    %v671 = vrot.slane %v662, %v670
    %v672 = vlaneseq
    %v673 = vshrl.u32 %v672, 7
    %v674 = vsub.s32 2, %v673
    %v675 = vrot.slane %v662, %v674
    %v676 = vlaneseq
    %v677 = vshrl.u32 %v676, 7
    %v678 = vsub.s32 3, %v677
    %v679 = vrot.slane %v662, %v678
    %vm684 = vcmask 130048
    %v686 = vsel %vm684, %v73, 0
    %688 = vmatprep.subr.bf16.mxu0 %v467
    %689 = vmatpush1.bf16.msra.mxu0 %v466
    %690 = vmatprep.subr.bf16.mxu0 %v471
    %691 = vmatpush1.bf16.msra.mxu0 %v470
    %692 = vmatprep.subr.bf16.mxu0 %v475
    %693 = vmatpush1.bf16.msra.mxu0 %v474
    %694 = vmatprep.subr.bf16.mxu0 %v479
    %695 = vmatpush1.bf16.msra.mxu0 %v478
    %696 = vmatprep.subr.bf16.mxu0 %v483
    %697 = vmatpush1.bf16.msra.mxu0 %v482
    %698 = vmatprep.subr.bf16.mxu0 %v487
    %699 = vmatpush1.bf16.msra.mxu0 %v486
    %700 = vmatprep.subr.bf16.mxu0 %v491
    %701 = vmatpush1.bf16.msra.mxu0 %v490
    %702 = vmatprep.subr.bf16.mxu0 %v495
    %703 = vmatpush1.bf16.msra.mxu0 %v494
    %704 = vmatprep.subr.bf16.mxu0 %v499
    %705 = vmatpush1.bf16.msra.mxu0 %v498
    %706 = vmatprep.subr.bf16.mxu0 %v503
    %707 = vmatpush1.bf16.msra.mxu0 %v502
    %708 = vmatprep.subr.bf16.mxu0 %v507
    %709 = vmatpush1.bf16.msra.mxu0 %v506
    %710 = vmatprep.subr.bf16.mxu0 %v511
    %711 = vmatpush1.bf16.msra.mxu0 %v510
    %712 = vmatprep.subr.bf16.mxu0 %v515
    %713 = vmatpush1.bf16.msra.mxu0 %v514
    %714 = vmatprep.subr.bf16.mxu0 %v519
    %715 = vmatpush1.bf16.msra.mxu0 %v518
    %716 = vmatprep.subr.bf16.mxu0 %v523
    %717 = vmatpush1.bf16.msra.mxu0 %v522
    %718 = vmatprep.subr.bf16.mxu0 %v527
    %719 = vmatpush1.bf16.msra.mxu0 %v526
    %720 = vmatprep.mubr.bf16.mxu0 %v68
    %721 = vmatmul.mubr.bf16.gmra.mrb[0].mxu0 %v67
    %v722 = vpop.f32.mrb[0].mxu0
    %v723 = vadd.f32 %v667, %v722
    %v724 = vpop.f32.mrb[0].mxu0
    %v725 = vadd.f32 %v671, %v724
    %v726 = vpop.f32.mrb[0].mxu0
    %v727 = vpop.f32.mrb[0].mxu0
    %728 = vdwg.mxu0
    %729 = vmatprep.subr.bf16.mxu0 %v531
    %730 = vmatpush1.bf16.msra.mxu0 %v530
    %731 = vmatprep.subr.bf16.mxu0 %v535
    %732 = vmatpush1.bf16.msra.mxu0 %v534
    %733 = vmatprep.subr.bf16.mxu0 %v539
    %734 = vmatpush1.bf16.msra.mxu0 %v538
    %735 = vmatprep.subr.bf16.mxu0 %v543
    %736 = vmatpush1.bf16.msra.mxu0 %v542
    %737 = vmatprep.subr.bf16.mxu0 %v547
    %738 = vmatpush1.bf16.msra.mxu0 %v546
    %739 = vmatprep.subr.bf16.mxu0 %v551
    %740 = vmatpush1.bf16.msra.mxu0 %v550
    %741 = vmatprep.subr.bf16.mxu0 %v555
    %742 = vmatpush1.bf16.msra.mxu0 %v554
    %743 = vmatprep.subr.bf16.mxu0 %v559
    %744 = vmatpush1.bf16.msra.mxu0 %v558
    %745 = vmatprep.subr.bf16.mxu0 %v563
    %746 = vmatpush1.bf16.msra.mxu0 %v562
    %747 = vmatprep.subr.bf16.mxu0 %v567
    %748 = vmatpush1.bf16.msra.mxu0 %v566
    %749 = vmatprep.subr.bf16.mxu0 %v571
    %750 = vmatpush1.bf16.msra.mxu0 %v570
    %751 = vmatprep.subr.bf16.mxu0 %v575
    %752 = vmatpush1.bf16.msra.mxu0 %v574
    %753 = vmatprep.subr.bf16.mxu0 %v579
    %754 = vmatpush1.bf16.msra.mxu0 %v578
    %755 = vmatprep.subr.bf16.mxu0 %v583
    %756 = vmatpush1.bf16.msra.mxu0 %v582
    %757 = vmatprep.subr.bf16.mxu0 %v587
    %758 = vmatpush1.bf16.msra.mxu0 %v586
    %759 = vmatprep.subr.bf16.mxu0 %v591
    %760 = vmatpush1.bf16.msra.mxu0 %v590
    %761 = vmatprep.mubr.bf16.mxu0 %v70
    %762 = vmatmul.mubr.bf16.gmra.mrb[0].mxu0 %v69
    %v763 = vpop.f32.mrb[0].mxu0
    %v764 = vadd.f32 %v723, %v763
    %v765 = vpop.f32.mrb[0].mxu0
    %v766 = vadd.f32 %v725, %v765
    %v767 = vpop.f32.mrb[0].mxu0
    %v768 = vpop.f32.mrb[0].mxu0
    %769 = vdwg.mxu0
    %770 = vmatprep.subr.bf16.mxu0 %v595
    %771 = vmatpush1.bf16.msra.mxu0 %v594
    %772 = vmatprep.subr.bf16.mxu0 %v599
    %773 = vmatpush1.bf16.msra.mxu0 %v598
    %774 = vmatprep.subr.bf16.mxu0 %v603
    %775 = vmatpush1.bf16.msra.mxu0 %v602
    %776 = vmatprep.subr.bf16.mxu0 %v607
    %777 = vmatpush1.bf16.msra.mxu0 %v606
    %778 = vmatprep.subr.bf16.mxu0 %v611
    %779 = vmatpush1.bf16.msra.mxu0 %v610
    %780 = vmatprep.subr.bf16.mxu0 %v615
    %781 = vmatpush1.bf16.msra.mxu0 %v614
    %782 = vmatprep.subr.bf16.mxu0 %v619
    %783 = vmatpush1.bf16.msra.mxu0 %v618
    %784 = vmatprep.subr.bf16.mxu0 %v623
    %785 = vmatpush1.bf16.msra.mxu0 %v622
    %786 = vmatprep.subr.bf16.mxu0 %v627
    %787 = vmatpush1.bf16.msra.mxu0 %v626
    %788 = vmatprep.subr.bf16.mxu0 %v631
    %789 = vmatpush1.bf16.msra.mxu0 %v630
    %790 = vmatprep.subr.bf16.mxu0 %v635
    %791 = vmatpush1.bf16.msra.mxu0 %v634
    %792 = vmatprep.subr.bf16.mxu0 %v639
    %793 = vmatpush1.bf16.msra.mxu0 %v638
    %794 = vmatprep.subr.bf16.mxu0 %v643
    %795 = vmatpush1.bf16.msra.mxu0 %v642
    %796 = vmatprep.subr.bf16.mxu0 %v647
    %797 = vmatpush1.bf16.msra.mxu0 %v646
    %798 = vmatprep.subr.bf16.mxu0 %v651
    %799 = vmatpush1.bf16.msra.mxu0 %v650
    %800 = vmatprep.subr.bf16.mxu0 %v655
    %801 = vmatpush1.bf16.msra.mxu0 %v654
    %802 = vmatprep.mubr.bf16.mxu0 %v72
    %803 = vmatmul.mubr.bf16.gmra.mrb[0].mxu0 %v71
    %v804 = vpop.f32.mrb[0].mxu0
    %v805 = vadd.f32 %v764, %v804
    %v806 = vpop.f32.mrb[0].mxu0
    %v807 = vadd.f32 %v766, %v806
    %v808 = vpop.f32.mrb[0].mxu0
    %v809 = vpop.f32.mrb[0].mxu0
    %810 = vdwg.mxu0
    %811 = vmatprep.subr.bf16.mxu0 %v659
    %812 = vmatpush1.bf16.msra.mxu0 %v658
    %813 = vmatprep.subr.bf16.mxu0 0
    %814 = vmatpush1.bf16.msra.mxu0 0
    %815 = vmatprep.subr.bf16.mxu0 0
    %816 = vmatpush1.bf16.msra.mxu0 0
    %817 = vmatprep.subr.bf16.mxu0 0
    %818 = vmatpush1.bf16.msra.mxu0 0
    %819 = vmatprep.subr.bf16.mxu0 0
    %820 = vmatpush1.bf16.msra.mxu0 0
    %821 = vmatprep.subr.bf16.mxu0 0
    %822 = vmatpush1.bf16.msra.mxu0 0
    %823 = vmatprep.subr.bf16.mxu0 0
    %824 = vmatpush1.bf16.msra.mxu0 0
    %825 = vmatprep.subr.bf16.mxu0 0
    %826 = vmatpush1.bf16.msra.mxu0 0
    %827 = vmatprep.subr.bf16.mxu0 0
    %828 = vmatpush1.bf16.msra.mxu0 0
    %829 = vmatprep.subr.bf16.mxu0 0
    %830 = vmatpush1.bf16.msra.mxu0 0
    %831 = vmatprep.subr.bf16.mxu0 0
    %832 = vmatpush1.bf16.msra.mxu0 0
    %833 = vmatprep.subr.bf16.mxu0 0
    %834 = vmatpush1.bf16.msra.mxu0 0
    %835 = vmatprep.subr.bf16.mxu0 0
    %836 = vmatpush1.bf16.msra.mxu0 0
    %837 = vmatprep.subr.bf16.mxu0 0
    %838 = vmatpush1.bf16.msra.mxu0 0
    %839 = vmatprep.subr.bf16.mxu0 0
    %840 = vmatpush1.bf16.msra.mxu0 0
    %841 = vmatprep.subr.bf16.mxu0 0
    %842 = vmatpush1.bf16.msra.mxu0 0
    %843 = vmatprep.mubr.bf16.mxu0 0
    %844 = vmatmul.mubr.bf16.gmra.mrb[0].mxu0 %v686
    %v845 = vpop.f32.mrb[0].mxu0
    %v846 = vadd.f32 %v805, %v845
    %v847 = vpop.f32.mrb[0].mxu0
    %v848 = vadd.f32 %v807, %v847
    %v849 = vpop.f32.mrb[0].mxu0
    %v850 = vpop.f32.mrb[0].mxu0
    %851 = vdwg.mxu0
    %852 = vmatprep.subr.bf16.mxu0 %v469
    %853 = vmatpush1.bf16.msra.mxu0 %v468
    %854 = vmatprep.subr.bf16.mxu0 %v473
    %855 = vmatpush1.bf16.msra.mxu0 %v472
    %856 = vmatprep.subr.bf16.mxu0 %v477
    %857 = vmatpush1.bf16.msra.mxu0 %v476
    %858 = vmatprep.subr.bf16.mxu0 %v481
    %859 = vmatpush1.bf16.msra.mxu0 %v480
    %860 = vmatprep.subr.bf16.mxu0 %v485
    %861 = vmatpush1.bf16.msra.mxu0 %v484
    %862 = vmatprep.subr.bf16.mxu0 %v489
    %863 = vmatpush1.bf16.msra.mxu0 %v488
    %864 = vmatprep.subr.bf16.mxu0 %v493
    %865 = vmatpush1.bf16.msra.mxu0 %v492
    %866 = vmatprep.subr.bf16.mxu0 %v497
    %867 = vmatpush1.bf16.msra.mxu0 %v496
    %868 = vmatprep.subr.bf16.mxu0 %v501
    %869 = vmatpush1.bf16.msra.mxu0 %v500
    %870 = vmatprep.subr.bf16.mxu0 %v505
    %871 = vmatpush1.bf16.msra.mxu0 %v504
    %872 = vmatprep.subr.bf16.mxu0 %v509
    %873 = vmatpush1.bf16.msra.mxu0 %v508
    %874 = vmatprep.subr.bf16.mxu0 %v513
    %875 = vmatpush1.bf16.msra.mxu0 %v512
    %876 = vmatprep.subr.bf16.mxu0 %v517
    %877 = vmatpush1.bf16.msra.mxu0 %v516
    %878 = vmatprep.subr.bf16.mxu0 %v521
    %879 = vmatpush1.bf16.msra.mxu0 %v520
    %880 = vmatprep.subr.bf16.mxu0 %v525
    %881 = vmatpush1.bf16.msra.mxu0 %v524
    %882 = vmatprep.subr.bf16.mxu0 %v529
    %883 = vmatpush1.bf16.msra.mxu0 %v528
    %884 = vmatprep.mubr.bf16.mxu0 %v68
    %885 = vmatmul.mubr.bf16.gmra.mrb[0].mxu0 %v67
    %v886 = vpop.f32.mrb[0].mxu0
    %v887 = vadd.f32 %v675, %v886
    %v888 = vpop.f32.mrb[0].mxu0
    %v889 = vadd.f32 %v679, %v888
    %v890 = vpop.f32.mrb[0].mxu0
    %v891 = vpop.f32.mrb[0].mxu0
    %892 = vdwg.mxu0
    %893 = vmatprep.subr.bf16.mxu0 %v533
    %894 = vmatpush1.bf16.msra.mxu0 %v532
    %895 = vmatprep.subr.bf16.mxu0 %v537
    %896 = vmatpush1.bf16.msra.mxu0 %v536
    %897 = vmatprep.subr.bf16.mxu0 %v541
    %898 = vmatpush1.bf16.msra.mxu0 %v540
    %899 = vmatprep.subr.bf16.mxu0 %v545
    %900 = vmatpush1.bf16.msra.mxu0 %v544
    %901 = vmatprep.subr.bf16.mxu0 %v549
    %902 = vmatpush1.bf16.msra.mxu0 %v548
    %903 = vmatprep.subr.bf16.mxu0 %v553
    %904 = vmatpush1.bf16.msra.mxu0 %v552
    %905 = vmatprep.subr.bf16.mxu0 %v557
    %906 = vmatpush1.bf16.msra.mxu0 %v556
    %907 = vmatprep.subr.bf16.mxu0 %v561
    %908 = vmatpush1.bf16.msra.mxu0 %v560
    %909 = vmatprep.subr.bf16.mxu0 %v565
    %910 = vmatpush1.bf16.msra.mxu0 %v564
    %911 = vmatprep.subr.bf16.mxu0 %v569
    %912 = vmatpush1.bf16.msra.mxu0 %v568
    %913 = vmatprep.subr.bf16.mxu0 %v573
    %914 = vmatpush1.bf16.msra.mxu0 %v572
    %915 = vmatprep.subr.bf16.mxu0 %v577
    %916 = vmatpush1.bf16.msra.mxu0 %v576
    %917 = vmatprep.subr.bf16.mxu0 %v581
    %918 = vmatpush1.bf16.msra.mxu0 %v580
    %919 = vmatprep.subr.bf16.mxu0 %v585
    %920 = vmatpush1.bf16.msra.mxu0 %v584
    %921 = vmatprep.subr.bf16.mxu0 %v589
    %922 = vmatpush1.bf16.msra.mxu0 %v588
    %923 = vmatprep.subr.bf16.mxu0 %v593
    %924 = vmatpush1.bf16.msra.mxu0 %v592
    %925 = vmatprep.mubr.bf16.mxu0 %v70
    %926 = vmatmul.mubr.bf16.gmra.mrb[0].mxu0 %v69
    %v927 = vpop.f32.mrb[0].mxu0
    %v928 = vadd.f32 %v887, %v927
    %v929 = vpop.f32.mrb[0].mxu0
    %v930 = vadd.f32 %v889, %v929
    %v931 = vpop.f32.mrb[0].mxu0
    %v932 = vpop.f32.mrb[0].mxu0
    %933 = vdwg.mxu0
    %934 = vmatprep.subr.bf16.mxu0 %v597
    %935 = vmatpush1.bf16.msra.mxu0 %v596
    %936 = vmatprep.subr.bf16.mxu0 %v601
    %937 = vmatpush1.bf16.msra.mxu0 %v600
    %938 = vmatprep.subr.bf16.mxu0 %v605
    %939 = vmatpush1.bf16.msra.mxu0 %v604
    %940 = vmatprep.subr.bf16.mxu0 %v609
    %941 = vmatpush1.bf16.msra.mxu0 %v608
    %942 = vmatprep.subr.bf16.mxu0 %v613
    %943 = vmatpush1.bf16.msra.mxu0 %v612
    %944 = vmatprep.subr.bf16.mxu0 %v617
    %945 = vmatpush1.bf16.msra.mxu0 %v616
    %946 = vmatprep.subr.bf16.mxu0 %v621
    %947 = vmatpush1.bf16.msra.mxu0 %v620
    %948 = vmatprep.subr.bf16.mxu0 %v625
    %949 = vmatpush1.bf16.msra.mxu0 %v624
    %950 = vmatprep.subr.bf16.mxu0 %v629
    %951 = vmatpush1.bf16.msra.mxu0 %v628
    %952 = vmatprep.subr.bf16.mxu0 %v633
    %953 = vmatpush1.bf16.msra.mxu0 %v632
    %954 = vmatprep.subr.bf16.mxu0 %v637
    %955 = vmatpush1.bf16.msra.mxu0 %v636
    %956 = vmatprep.subr.bf16.mxu0 %v641
    %957 = vmatpush1.bf16.msra.mxu0 %v640
    %958 = vmatprep.subr.bf16.mxu0 %v645
    %959 = vmatpush1.bf16.msra.mxu0 %v644
    %960 = vmatprep.subr.bf16.mxu0 %v649
    %961 = vmatpush1.bf16.msra.mxu0 %v648
    %962 = vmatprep.subr.bf16.mxu0 %v653
    %963 = vmatpush1.bf16.msra.mxu0 %v652
    %964 = vmatprep.subr.bf16.mxu0 %v657
    %965 = vmatpush1.bf16.msra.mxu0 %v656
    %966 = vmatprep.mubr.bf16.mxu0 %v72
    %967 = vmatmul.mubr.bf16.gmra.mrb[0].mxu0 %v71
    %v968 = vpop.f32.mrb[0].mxu0
    %v969 = vadd.f32 %v928, %v968
    %v970 = vpop.f32.mrb[0].mxu0
    %v971 = vadd.f32 %v930, %v970
    %v972 = vpop.f32.mrb[0].mxu0
    %v973 = vpop.f32.mrb[0].mxu0
    %974 = vdwg.mxu0
    %975 = vmatprep.subr.bf16.mxu0 %v661
    %976 = vmatpush1.bf16.msra.mxu0 %v660
    %977 = vmatprep.subr.bf16.mxu0 0
    %978 = vmatpush1.bf16.msra.mxu0 0
    %979 = vmatprep.subr.bf16.mxu0 0
    %980 = vmatpush1.bf16.msra.mxu0 0
    %981 = vmatprep.subr.bf16.mxu0 0
    %982 = vmatpush1.bf16.msra.mxu0 0
    %983 = vmatprep.subr.bf16.mxu0 0
    %984 = vmatpush1.bf16.msra.mxu0 0
    %985 = vmatprep.subr.bf16.mxu0 0
    %986 = vmatpush1.bf16.msra.mxu0 0
    %987 = vmatprep.subr.bf16.mxu0 0
    %988 = vmatpush1.bf16.msra.mxu0 0
    %989 = vmatprep.subr.bf16.mxu0 0
    %990 = vmatpush1.bf16.msra.mxu0 0
    %991 = vmatprep.subr.bf16.mxu0 0
    %992 = vmatpush1.bf16.msra.mxu0 0
    %993 = vmatprep.subr.bf16.mxu0 0
    %994 = vmatpush1.bf16.msra.mxu0 0
    %995 = vmatprep.subr.bf16.mxu0 0
    %996 = vmatpush1.bf16.msra.mxu0 0
    %997 = vmatprep.subr.bf16.mxu0 0
    %998 = vmatpush1.bf16.msra.mxu0 0
    %999 = vmatprep.subr.bf16.mxu0 0
    %1000 = vmatpush1.bf16.msra.mxu0 0
    %1001 = vmatprep.subr.bf16.mxu0 0
    %1002 = vmatpush1.bf16.msra.mxu0 0
    %1003 = vmatprep.subr.bf16.mxu0 0
    %1004 = vmatpush1.bf16.msra.mxu0 0
    %1005 = vmatprep.subr.bf16.mxu0 0
    %1006 = vmatpush1.bf16.msra.mxu0 0
    %1007 = vmatprep.mubr.bf16.mxu0 0
    %1008 = vmatmul.mubr.bf16.gmra.mrb[0].mxu0 %v686
    %v1009 = vpop.f32.mrb[0].mxu0
    %v1010 = vadd.f32 %v969, %v1009
    %v1011 = vpop.f32.mrb[0].mxu0
    %v1012 = vadd.f32 %v971, %v1011
    %v1013 = vpop.f32.mrb[0].mxu0
    %v1014 = vpop.f32.mrb[0].mxu0
    %1015 = vdwg.mxu0
    %vm1016 = vcmp.gt.f32.partialorder %v846, 0.0
    %vm1017 = vcmp.gt.f32.partialorder %v848, 0.0
    %vm1018 = vcmp.gt.f32.partialorder %v1010, 0.0
    %vm1019 = vcmp.gt.f32.partialorder %v1012, 0.0
    %v1020 = vmul.f32 %v846, 0.1
    %v1021 = vmul.f32 %v848, 0.1
    %v1022 = vmul.f32 %v1010, 0.1
    %v1023 = vmul.f32 %v1012, 0.1
    %v1024 = vsel %vm1016, %v846, %v1020
    %v1025 = vsel %vm1017, %v848, %v1021
    %v1026 = vsel %vm1018, %v1010, %v1022
    %v1027 = vsel %vm1019, %v1012, %v1023
    %v1028 = vld [vmem:[#allocation7] sm:$0xf]
    %v1030 = vlaneseq
    %v1031 = vshrl.u32 %v1030, 7
    %v1032 = vsub.s32 0, %v1031
    %v1033 = vrot.slane %v1028, %v1032
    %v1034 = vlaneseq
    %v1035 = vshrl.u32 %v1034, 7
    %v1036 = vsub.s32 1, %v1035
    %v1037 = vrot.slane %v1028, %v1036
    %v1038 = vlaneseq
    %v1039 = vshrl.u32 %v1038, 7
    %v1040 = vsub.s32 2, %v1039
    %v1041 = vrot.slane %v1028, %v1040
    %v1042 = vlaneseq
    %v1043 = vshrl.u32 %v1042, 7
    %v1044 = vsub.s32 3, %v1043
    %v1045 = vrot.slane %v1028, %v1044
    %v1050 = vmul.f32 %v1024, %v1033
    %v1051 = vmul.f32 %v1025, %v1037
    %v1052 = vmul.f32 %v1026, %v1041
    %v1053 = vmul.f32 %v1027, %v1045
    %v1054 = vadd.f32 %v1050, %v1051
    %v1055 = vadd.f32 %v1054, %v1052
    %v1056 = vadd.f32 %v1055, %v1053
    %1057 = vadd.xlane.f32.xlu0 %v1056
    %v1058 = vpop.xlane.xlu0 %1057
    %v1059 = vld [vmem:[#allocation2] sm:$0x1]
    %v1061 = vlaneseq
    %v1062 = vshrl.u32 %v1061, 7
    %v1063 = vsub.s32 0, %v1062
    %v1064 = vrot.slane %v1059, %v1063
    %v1066 = vadd.f32 %v1058, %v1064
    %v1067 = vsub.f32 0.0, %v1066
    %v1068 = vmul.f32 %v1067, 1.442695
    %v1069 = vpow.pop %v1068
    %v1070 = vadd.f32 %v1069, 1.0
    %v1071 = vrcp.pop %v1070
    %v1072 = vmul.f32 1.0, %v1071
    %vm1073 = vcmask 7168
    %1074 = vst.msk [vmem:[%s5] sm:$0xff] %vm1073, %v1072
    // Predicated region
    $region34: #{discriminator_forward.1} parent=1 // pred_check
      _
    $region35: #{discriminator_forward.1} parent=1 // pred_check_branch
      %1076 = sbr.rel (0) target = $region37
    $region36: #{discriminator_forward.1} parent=1 // pred_region
      _
    $region37: #{discriminator_forward.1} parent=1 // pred_fallthru
      _
    // Predicated region
    $region38: #{discriminator_forward.1} parent=1 // pred_check
      _
    $region39: #{discriminator_forward.1} parent=1 // pred_check_branch
      %1078 = sbr.rel (0) target = $region41
    $region40: #{discriminator_forward.1} parent=1 // pred_region
      _
    $region41: #{discriminator_forward.1} parent=1 // pred_fallthru
      _
    %1079 = vsyncpa [#allocation4], 1
    %1080 = vsyncpa [#allocation6], 1

</llo_original>
